<compile_context>
chip_gen: v7x
topology: tpu7x:2x2x1
jax: 0.10.0
libtpu: 0.0.40
codegen_flags: <defaults>
</compile_context>

<pallas_src>
import math

import jax
import jax.numpy as jnp
from jax.experimental import pallas as pl
from jax.experimental.pallas import tpu as pltpu


def _mlp_kernel(x_ref, w1_ref, b1_ref, w2_ref, b2_ref, o_ref):
    # Hidden layer: (TB, F)bf16 @ (F, Hp)bf16 -> f32 acc, bias+ReLU in f32.
    x = x_ref[...].astype(jnp.bfloat16)
    h = jnp.dot(x, w1_ref[...], preferred_element_type=jnp.float32)
    h = jnp.maximum(h + b1_ref[...], 0.0)
    # Output layer: (TB, Hp)bf16 @ (Hp, Op)bf16 -> f32 acc, bias in f32.
    out = jnp.dot(h.astype(jnp.bfloat16), w2_ref[...],
                  preferred_element_type=jnp.float32)
    o_ref[...] = (out + b2_ref[...]).astype(o_ref.dtype)


def mlp_forward(x, w1, b1, w2, b2, *, block_b=128):
    """x: (B, ...) flattened row-major to (B, F); returns (B, 2) in f32."""
    B = x.shape[0]
    x2d = x.reshape(B, -1).astype(jnp.float32)
    F_in = x2d.shape[1]
    H = w1.shape[1]
    O = w2.shape[1]

    # Pad hidden dim to a multiple of 128 and output dim to 128 lanes so every
    # lane dimension is unmasked / MXU-friendly.  Zero padding is exact.
    Hp = ((H + 127) // 128) * 128
    Op = max(((O + 127) // 128) * 128, 128)

    w1p = jnp.pad(w1, ((0, 0), (0, Hp - H))).astype(jnp.bfloat16)
    b1p = jnp.pad(b1, (0, Hp - H)).astype(jnp.float32).reshape(1, Hp)
    w2p = jnp.pad(w2, ((0, Hp - H), (0, Op - O))).astype(jnp.bfloat16)
    b2p = jnp.pad(b2, (0, Op - O)).astype(jnp.float32).reshape(1, Op)

    # Batch tile: multiple of 8 sublanes, capped at block_b; pad B up to a
    # multiple of TB so the grid divides evenly.
    TB = min(block_b, max(8, ((B + 7) // 8) * 8))
    Bp = ((B + TB - 1) // TB) * TB
    xp = jnp.pad(x2d, ((0, Bp - B), (0, 0)))

    grid = (Bp // TB,)

    cost = pl.CostEstimate(
        flops=2 * Bp * (F_in * Hp + Hp * Op),
        transcendentals=0,
        bytes_accessed=(xp.size * 4 + w1p.size * 2 + w2p.size * 2
                        + b1p.size * 4 + b2p.size * 4 + Bp * Op * 4),
    )

    out = pl.pallas_call(
        _mlp_kernel,
        out_shape=jax.ShapeDtypeStruct((Bp, Op), jnp.float32),
        grid=grid,
        in_specs=[
            pl.BlockSpec((TB, F_in), lambda i: (i, 0)),   # x: streams per tile
            pl.BlockSpec((F_in, Hp), lambda i: (0, 0)),   # W1: resident
            pl.BlockSpec((1, Hp), lambda i: (0, 0)),      # b1: resident
            pl.BlockSpec((Hp, Op), lambda i: (0, 0)),     # W2: resident
            pl.BlockSpec((1, Op), lambda i: (0, 0)),      # b2: resident
        ],
        out_specs=pl.BlockSpec((TB, Op), lambda i: (i, 0)),
        compiler_params=pltpu.CompilerParams(
            dimension_semantics=("parallel",)),
        cost_estimate=cost,
    )(xp, w1p, b1p, w2p, b2p)

    # Strip batch padding and the padded output lanes.
    return out[:B, :O]


def init_params(inchannel, key):
    """Deterministic init mimicking torch.nn.Linear default (uniform +-1/sqrt(fan_in))."""
    F_in = inchannel ** 2
    H, O = 200, 2
    k1, k2, k3, k4 = jax.random.split(key, 4)
    bound1 = 1.0 / math.sqrt(F_in)
    bound2 = 1.0 / math.sqrt(H)
    # Stored already transposed relative to torch.nn.Linear: (in, out).
    w1 = jax.random.uniform(k1, (F_in, H), jnp.float32, -bound1, bound1)
    b1 = jax.random.uniform(k2, (H,), jnp.float32, -bound1, bound1)
    w2 = jax.random.uniform(k3, (H, O), jnp.float32, -bound2, bound2)
    b2 = jax.random.uniform(k4, (O,), jnp.float32, -bound2, bound2)
    return w1, b1, w2, b2


if __name__ == "__main__":
    key = jax.random.PRNGKey(0)
    k_x, k_p = jax.random.split(key)

    inchannel = 16  # -> flattened feature dim = 256
    B = 2
    # Input consistent with the flatten in forward(): (B, inchannel, inchannel).
    x = jax.random.normal(k_x, (B, inchannel, inchannel), jnp.float32)

    w1, b1, w2, b2 = init_params(inchannel, k_p)

    out = mlp_forward(x, w1, b1, w2, b2)
    out = jax.block_until_ready(out)

    # Pure-JAX f32 reference; looser tolerance because the kernel uses bf16
    # MXU operands with f32 accumulation.
    x2d = x.reshape(B, -1)
    ref = jnp.maximum(x2d @ w1 + b1, 0.0) @ w2 + b2
    assert out.shape == (B, 2)
    assert jnp.allclose(out, ref, atol=2e-2, rtol=2e-2), (
        f"max abs err {jnp.max(jnp.abs(out - ref))}")

    print("KERNEL_OK")
</pallas_src>

<mosaic_0001>
module attributes {stable_mosaic.version = 11 : i64} {
  func.func @_mlp_kernel(%arg0: i32, %arg1: memref<8x256xf32, #tpu.memory_space<vmem>>, %arg2: memref<256x256xbf16, #tpu.memory_space<vmem>>, %arg3: memref<1x256xf32, #tpu.memory_space<vmem>>, %arg4: memref<256x128xbf16, #tpu.memory_space<vmem>>, %arg5: memref<1x128xf32, #tpu.memory_space<vmem>>, %arg6: memref<8x128xf32, #tpu.memory_space<vmem>>) attributes {dimension_semantics = [#tpu.dimension_semantics<parallel>], iteration_bounds = array<i64: 1>, scalar_prefetch = 0 : i64, scratch_operands = 0 : i64, tpu.core_type = #tpu.core_type<tc>, window_params = [{transform_indices = @transform_0, window_bounds = array<i64: 8, 256>}, {pipeline_mode = #tpu.pipeline_mode<synchronous>, transform_indices = @transform_1, window_bounds = array<i64: 256, 256>}, {pipeline_mode = #tpu.pipeline_mode<synchronous>, transform_indices = @transform_2, window_bounds = array<i64: 1, 256>}, {pipeline_mode = #tpu.pipeline_mode<synchronous>, transform_indices = @transform_3, window_bounds = array<i64: 256, 128>}, {pipeline_mode = #tpu.pipeline_mode<synchronous>, transform_indices = @transform_4, window_bounds = array<i64: 1, 128>}, {transform_indices = @transform_5, window_bounds = array<i64: 8, 128>}]} {
    %c0 = arith.constant 0 : index
    %c0_0 = arith.constant 0 : index
    %0 = vector.load %arg1[%c0, %c0_0] : memref<8x256xf32, #tpu.memory_space<vmem>>, vector<8x256xf32>
    %1 = arith.truncf %0 : vector<8x256xf32> to vector<8x256xbf16>
    %c0_1 = arith.constant 0 : index
    %c0_2 = arith.constant 0 : index
    %2 = vector.load %arg2[%c0_1, %c0_2] : memref<256x256xbf16, #tpu.memory_space<vmem>>, vector<256x256xbf16>
    %cst = arith.constant dense<0.000000e+00> : vector<8x256xf32>
    %3 = tpu.matmul %1, %2, %cst {dimension_numbers = #tpu.dot_dimension_numbers<[1], [0], [0], [1], [0, 0, 1, 1], [], []>} : vector<8x256xbf16>, vector<256x256xbf16>, vector<8x256xf32> -> vector<8x256xf32>
    %c0_3 = arith.constant 0 : index
    %c0_4 = arith.constant 0 : index
    %4 = vector.load %arg3[%c0_3, %c0_4] : memref<1x256xf32, #tpu.memory_space<vmem>>, vector<1x256xf32>
    %5 = vector.broadcast %4 : vector<1x256xf32> to vector<8x256xf32>
    %6 = arith.addf %3, %5 : vector<8x256xf32>
    %cst_5 = arith.constant 0.000000e+00 : f32
    %7 = vector.broadcast %cst_5 : f32 to vector<8x256xf32>
    %8 = arith.maximumf %6, %7 : vector<8x256xf32>
    %9 = arith.truncf %8 : vector<8x256xf32> to vector<8x256xbf16>
    %c0_6 = arith.constant 0 : index
    %c0_7 = arith.constant 0 : index
    %10 = vector.load %arg4[%c0_6, %c0_7] : memref<256x128xbf16, #tpu.memory_space<vmem>>, vector<256x128xbf16>
    %cst_8 = arith.constant dense<0.000000e+00> : vector<8x128xf32>
    %11 = tpu.matmul %9, %10, %cst_8 {dimension_numbers = #tpu.dot_dimension_numbers<[1], [0], [0], [1], [0, 0, 1, 1], [], []>} : vector<8x256xbf16>, vector<256x128xbf16>, vector<8x128xf32> -> vector<8x128xf32>
    %c0_9 = arith.constant 0 : index
    %c0_10 = arith.constant 0 : index
    %12 = vector.load %arg5[%c0_9, %c0_10] : memref<1x128xf32, #tpu.memory_space<vmem>>, vector<1x128xf32>
    %13 = vector.broadcast %12 : vector<1x128xf32> to vector<8x128xf32>
    %14 = arith.addf %11, %13 : vector<8x128xf32>
    %c0_11 = arith.constant 0 : index
    %c0_12 = arith.constant 0 : index
    %15 = vector.load %arg6[%c0_11, %c0_12] : memref<8x128xf32, #tpu.memory_space<vmem>>, vector<8x128xf32>
    tpu.vector_store %arg6[%c0_11, %c0_12], %14 {strides = array<i32>} : memref<8x128xf32, #tpu.memory_space<vmem>>, vector<8x128xf32>,
    return
  }
  func.func @transform_0(%arg0: i32) -> (i32, i32) {
    %c0_i32 = arith.constant 0 : i32
    %c0_i32_0 = arith.constant 0 : i32
    return %arg0, %c0_i32 : i32, i32
  }
  func.func @transform_1(%arg0: i32) -> (i32, i32) {
    %c0_i32 = arith.constant 0 : i32
    %c0_i32_0 = arith.constant 0 : i32
    %c0_i32_1 = arith.constant 0 : i32
    return %c0_i32, %c0_i32_0 : i32, i32
  }
  func.func @transform_2(%arg0: i32) -> (i32, i32) {
    %c0_i32 = arith.constant 0 : i32
    %c0_i32_0 = arith.constant 0 : i32
    %c0_i32_1 = arith.constant 0 : i32
    return %c0_i32, %c0_i32_0 : i32, i32
  }
  func.func @transform_3(%arg0: i32) -> (i32, i32) {
    %c0_i32 = arith.constant 0 : i32
    %c0_i32_0 = arith.constant 0 : i32
    %c0_i32_1 = arith.constant 0 : i32
    return %c0_i32, %c0_i32_0 : i32, i32
  }
  func.func @transform_4(%arg0: i32) -> (i32, i32) {
    %c0_i32 = arith.constant 0 : i32
    %c0_i32_0 = arith.constant 0 : i32
    %c0_i32_1 = arith.constant 0 : i32
    return %c0_i32, %c0_i32_0 : i32, i32
  }
  func.func @transform_5(%arg0: i32) -> (i32, i32) {
    %c0_i32 = arith.constant 0 : i32
    %c0_i32_0 = arith.constant 0 : i32
    return %arg0, %c0_i32 : i32, i32
  }
}

</mosaic_0001>

<llo_original>
// kernel: tpu_custom_call.1
$region0: #{tpu_custom_call.1}
  #allocation0 [shape = 'u32[]', space=smem, size = 0x4, offset = 0x4, fixed_abs, tag = 'smem constant byte address 0x4 - core index']
  #allocation1 [shape = 'u32[144,128]{1,0:T(1,128)}', space=vmem, size = 0x12000, scoped, tag = 'internal scratch']
  %s0 = inlined_call_operand.hbm [shape: f32[8,256], index: 0, kind: input, shape index: {}]
  %s1 = inlined_call_operand.hbm [shape: bf16[256,256], index: 1, kind: input, shape index: {}]
  %s2 = inlined_call_operand.vmem [shape: f32[1,256], index: 2, kind: input, shape index: {}]
  %s3 = inlined_call_operand.hbm [shape: bf16[256,128], index: 3, kind: input, shape index: {}]
  %s4 = inlined_call_operand.vmem [shape: f32[1,128], index: 4, kind: input, shape index: {}]
  %s5 = inlined_call_operand.hbm [shape: f32[8,128], index: 5, kind: output, shape index: {}]
  %s6 = sld [smem:[#allocation0]]
  $region42: #{tpu_custom_call.1} parent=0
    _
  %s8 = ssub.s32 1, %s6
  %s9 = scalar_select 0, %s8, %s6
  $region1: #{tpu_custom_call.1} parent=0
    #allocation2 [shape = 'u8[8192]{0}', space=vmem, size = 0x2000, scoped, tag = 'input window, operand 0, single buffered']
    #allocation3 [shape = 's32[1]{0}', space=sflag, size = 0x4, scoped, tag = 'scoped memory for tpu_custom_call.1']
    #allocation4 [shape = 's32[1]{0}', space=sflag, size = 0x4, scoped, tag = 'scoped memory for tpu_custom_call.1']
    #allocation5 [shape = 'u8[131072]{0}', space=vmem, size = 0x20000, scoped, tag = 'input window, operand 1, single buffered']
    #allocation6 [shape = 's32[1]{0}', space=sflag, size = 0x4, scoped, tag = 'scoped memory for tpu_custom_call.1']
    #allocation7 [shape = 'u8[65536]{0}', space=vmem, size = 0x10000, scoped, tag = 'input window, operand 3, single buffered']
    #allocation8 [shape = 'u8[4096]{0}', space=vmem, size = 0x1000, scoped, tag = 'output window, operand 0, single buffered']
    %10 = vsyncpa [#allocation3], 0
    %11 = vsyncpa [#allocation6], 0
    %12 = vsyncpa [#allocation4], 0
    // Predicated region
    $region2: #{tpu_custom_call.1} parent=1 // pred_check
      _
    $region3: #{tpu_custom_call.1} parent=1 // pred_check_branch
      %14 = sbr.rel (0) target = $region5
    $region4: #{tpu_custom_call.1} parent=1 // pred_region
      %s16 = ssub.s32 256, 256
      %17 = vsyncadd [#allocation3], %s16
      %s19 = sshll.u32 [#allocation2], 4
      %s20 = int_to_ptr.vmem [resolvable:$true] %s19
      %22 = dma.hbm_to_vmem [thread:$0]  %s0, 256, %s20, [#allocation3]
    $region5: #{tpu_custom_call.1} parent=1 // pred_fallthru
      _
    // Predicated region
    $region6: #{tpu_custom_call.1} parent=1 // pred_check
      _
    $region7: #{tpu_custom_call.1} parent=1 // pred_check_branch
      %24 = sbr.rel (0) target = $region9
    $region8: #{tpu_custom_call.1} parent=1 // pred_region
      %s26 = ssub.s32 4096, 4096
      %27 = vsyncadd [#allocation6], %s26
      %s28 = sshll.u32 [#allocation5], 4
      %s29 = int_to_ptr.vmem [resolvable:$true] %s28
      %34 = dma.hbm_to_vmem [thread:$0]  %s1, 4096, %s29, [#allocation6], 128, 128, 8
    $region9: #{tpu_custom_call.1} parent=1 // pred_fallthru
      _
    // Predicated region
    $region10: #{tpu_custom_call.1} parent=1 // pred_check
      _
    $region11: #{tpu_custom_call.1} parent=1 // pred_check_branch
      %36 = sbr.rel (0) target = $region13
    $region12: #{tpu_custom_call.1} parent=1 // pred_region
      _
    $region13: #{tpu_custom_call.1} parent=1 // pred_fallthru
      _
    // Predicated region
    $region14: #{tpu_custom_call.1} parent=1 // pred_check
      _
    $region15: #{tpu_custom_call.1} parent=1 // pred_check_branch
      %38 = sbr.rel (0) target = $region17
    $region16: #{tpu_custom_call.1} parent=1 // pred_region
      %s40 = ssub.s32 2048, 2048
      %41 = vsyncadd [#allocation6], %s40
      %s42 = sshll.u32 [#allocation7], 4
      %s43 = int_to_ptr.vmem [resolvable:$true] %s42
      %48 = dma.hbm_to_vmem [thread:$0]  %s3, 2048, %s43, [#allocation6], 64, 64, 4
    $region17: #{tpu_custom_call.1} parent=1 // pred_fallthru
      _
    // Predicated region
    $region18: #{tpu_custom_call.1} parent=1 // pred_check
      _
    $region19: #{tpu_custom_call.1} parent=1 // pred_check_branch
      %50 = sbr.rel (0) target = $region21
    $region20: #{tpu_custom_call.1} parent=1 // pred_region
      _
    $region21: #{tpu_custom_call.1} parent=1 // pred_fallthru
      _
    // Predicated region
    $region22: #{tpu_custom_call.1} parent=1 // pred_check
      _
    $region23: #{tpu_custom_call.1} parent=1 // pred_check_branch
      %52 = sbr.rel (0) target = $region25
    $region24: #{tpu_custom_call.1} parent=1 // pred_region
      %53 = dma.done [#allocation3], 256
    $region25: #{tpu_custom_call.1} parent=1 // pred_fallthru
      _
    // Predicated region
    $region26: #{tpu_custom_call.1} parent=1 // pred_check
      _
    $region27: #{tpu_custom_call.1} parent=1 // pred_check_branch
      %55 = sbr.rel (0) target = $region29
    $region28: #{tpu_custom_call.1} parent=1 // pred_region
      %56 = dma.done [#allocation6], 4096
    $region29: #{tpu_custom_call.1} parent=1 // pred_fallthru
      _
    // Predicated region
    $region30: #{tpu_custom_call.1} parent=1 // pred_check
      _
    $region31: #{tpu_custom_call.1} parent=1 // pred_check_branch
      %58 = sbr.rel (0) target = $region33
    $region32: #{tpu_custom_call.1} parent=1 // pred_region
      %59 = dma.done [#allocation6], 2048
    $region33: #{tpu_custom_call.1} parent=1 // pred_fallthru
      _
    %v61 = vld [vmem:[#allocation2] sm:$0xff]
    %v62 = vld [vmem:[#allocation2 + $0x8] sm:$0xff]
    %v63 = vpack.c.bf16 %v61, %v61
    %v64 = vpack.c.bf16 %v62, %v62
    %v65 = vld [vmem:[#allocation5] sm:$0xff]
    %v66 = vld [vmem:[#allocation5 + $0x8] sm:$0xff]
    %v67 = vld [vmem:[#allocation5 + $0x10] sm:$0xff]
    %v68 = vld [vmem:[#allocation5 + $0x18] sm:$0xff]
    %v69 = vld [vmem:[#allocation5 + $0x20] sm:$0xff]
    %v70 = vld [vmem:[#allocation5 + $0x28] sm:$0xff]
    %v71 = vld [vmem:[#allocation5 + $0x30] sm:$0xff]
    %v72 = vld [vmem:[#allocation5 + $0x38] sm:$0xff]
    %v73 = vld [vmem:[#allocation5 + $0x40] sm:$0xff]
    %v74 = vld [vmem:[#allocation5 + $0x48] sm:$0xff]
    %v75 = vld [vmem:[#allocation5 + $0x50] sm:$0xff]
    %v76 = vld [vmem:[#allocation5 + $0x58] sm:$0xff]
    %v77 = vld [vmem:[#allocation5 + $0x60] sm:$0xff]
    %v78 = vld [vmem:[#allocation5 + $0x68] sm:$0xff]
    %v79 = vld [vmem:[#allocation5 + $0x70] sm:$0xff]
    %v80 = vld [vmem:[#allocation5 + $0x78] sm:$0xff]
    %v81 = vld [vmem:[#allocation5 + $0x80] sm:$0xff]
    %v82 = vld [vmem:[#allocation5 + $0x88] sm:$0xff]
    %v83 = vld [vmem:[#allocation5 + $0x90] sm:$0xff]
    %v84 = vld [vmem:[#allocation5 + $0x98] sm:$0xff]
    %v85 = vld [vmem:[#allocation5 + $0xa0] sm:$0xff]
    %v86 = vld [vmem:[#allocation5 + $0xa8] sm:$0xff]
    %v87 = vld [vmem:[#allocation5 + $0xb0] sm:$0xff]
    %v88 = vld [vmem:[#allocation5 + $0xb8] sm:$0xff]
    %v89 = vld [vmem:[#allocation5 + $0xc0] sm:$0xff]
    %v90 = vld [vmem:[#allocation5 + $0xc8] sm:$0xff]
    %v91 = vld [vmem:[#allocation5 + $0xd0] sm:$0xff]
    %v92 = vld [vmem:[#allocation5 + $0xd8] sm:$0xff]
    %v93 = vld [vmem:[#allocation5 + $0xe0] sm:$0xff]
    %v94 = vld [vmem:[#allocation5 + $0xe8] sm:$0xff]
    %v95 = vld [vmem:[#allocation5 + $0xf0] sm:$0xff]
    %v96 = vld [vmem:[#allocation5 + $0xf8] sm:$0xff]
    %v97 = vld [vmem:[%s2] sm:$0x3]
    %v99 = vlaneseq
    %v100 = vshrl.u32 %v99, 7
    %v101 = vsub.s32 0, %v100
    %v102 = vrot.slane %v97, %v101
    %v103 = vlaneseq
    %v104 = vshrl.u32 %v103, 7
    %v105 = vsub.s32 1, %v104
    %v106 = vrot.slane %v97, %v105
    %v141 = vunpack.c.l.b16 %v65
    %v142 = vunpack.c.h.b16 %v65
    %v143 = vunpack.c.l.b16 %v66
    %v144 = vunpack.c.h.b16 %v66
    %v145 = vunpack.c.l.b16 %v67
    %v146 = vunpack.c.h.b16 %v67
    %v147 = vunpack.c.l.b16 %v68
    %v148 = vunpack.c.h.b16 %v68
    %v149 = vunpack.c.l.b16 %v69
    %v150 = vunpack.c.h.b16 %v69
    %v151 = vunpack.c.l.b16 %v70
    %v152 = vunpack.c.h.b16 %v70
    %v153 = vunpack.c.l.b16 %v71
    %v154 = vunpack.c.h.b16 %v71
    %v155 = vunpack.c.l.b16 %v72
    %v156 = vunpack.c.h.b16 %v72
    %v157 = vunpack.c.l.b16 %v73
    %v158 = vunpack.c.h.b16 %v73
    %v159 = vunpack.c.l.b16 %v74
    %v160 = vunpack.c.h.b16 %v74
    %v161 = vunpack.c.l.b16 %v75
    %v162 = vunpack.c.h.b16 %v75
    %v163 = vunpack.c.l.b16 %v76
    %v164 = vunpack.c.h.b16 %v76
    %v165 = vunpack.c.l.b16 %v77
    %v166 = vunpack.c.h.b16 %v77
    %v167 = vunpack.c.l.b16 %v78
    %v168 = vunpack.c.h.b16 %v78
    %v169 = vunpack.c.l.b16 %v79
    %v170 = vunpack.c.h.b16 %v79
    %v171 = vunpack.c.l.b16 %v80
    %v172 = vunpack.c.h.b16 %v80
    %v173 = vunpack.c.l.b16 %v81
    %v174 = vunpack.c.h.b16 %v81
    %v175 = vunpack.c.l.b16 %v82
    %v176 = vunpack.c.h.b16 %v82
    %v177 = vunpack.c.l.b16 %v83
    %v178 = vunpack.c.h.b16 %v83
    %v179 = vunpack.c.l.b16 %v84
    %v180 = vunpack.c.h.b16 %v84
    %v181 = vunpack.c.l.b16 %v85
    %v182 = vunpack.c.h.b16 %v85
    %v183 = vunpack.c.l.b16 %v86
    %v184 = vunpack.c.h.b16 %v86
    %v185 = vunpack.c.l.b16 %v87
    %v186 = vunpack.c.h.b16 %v87
    %v187 = vunpack.c.l.b16 %v88
    %v188 = vunpack.c.h.b16 %v88
    %v189 = vunpack.c.l.b16 %v89
    %v190 = vunpack.c.h.b16 %v89
    %v191 = vunpack.c.l.b16 %v90
    %v192 = vunpack.c.h.b16 %v90
    %v193 = vunpack.c.l.b16 %v91
    %v194 = vunpack.c.h.b16 %v91
    %v195 = vunpack.c.l.b16 %v92
    %v196 = vunpack.c.h.b16 %v92
    %v197 = vunpack.c.l.b16 %v93
    %v198 = vunpack.c.h.b16 %v93
    %v199 = vunpack.c.l.b16 %v94
    %v200 = vunpack.c.h.b16 %v94
    %v201 = vunpack.c.l.b16 %v95
    %v202 = vunpack.c.h.b16 %v95
    %v203 = vunpack.c.l.b16 %v96
    %v204 = vunpack.c.h.b16 %v96
    %v205 = vpack.c.b16 %v143, %v141
    %v206 = vpack.c.b16 %v144, %v142
    %v207 = vpack.c.b16 %v147, %v145
    %v208 = vpack.c.b16 %v148, %v146
    %v209 = vpack.c.b16 %v151, %v149
    %v210 = vpack.c.b16 %v152, %v150
    %v211 = vpack.c.b16 %v155, %v153
    %v212 = vpack.c.b16 %v156, %v154
    %v213 = vpack.c.b16 %v159, %v157
    %v214 = vpack.c.b16 %v160, %v158
    %v215 = vpack.c.b16 %v163, %v161
    %v216 = vpack.c.b16 %v164, %v162
    %v217 = vpack.c.b16 %v167, %v165
    %v218 = vpack.c.b16 %v168, %v166
    %v219 = vpack.c.b16 %v171, %v169
    %v220 = vpack.c.b16 %v172, %v170
    %v221 = vpack.c.b16 %v175, %v173
    %v222 = vpack.c.b16 %v176, %v174
    %v223 = vpack.c.b16 %v179, %v177
    %v224 = vpack.c.b16 %v180, %v178
    %v225 = vpack.c.b16 %v183, %v181
    %v226 = vpack.c.b16 %v184, %v182
    %v227 = vpack.c.b16 %v187, %v185
    %v228 = vpack.c.b16 %v188, %v186
    %v229 = vpack.c.b16 %v191, %v189
    %v230 = vpack.c.b16 %v192, %v190
    %v231 = vpack.c.b16 %v195, %v193
    %v232 = vpack.c.b16 %v196, %v194
    %v233 = vpack.c.b16 %v199, %v197
    %v234 = vpack.c.b16 %v200, %v198
    %v235 = vpack.c.b16 %v203, %v201
    %v236 = vpack.c.b16 %v204, %v202
    %269 = vmatprep.subr.bf16.mxu0 %v206
    %270 = vmatpush1.bf16.msra.mxu0 %v205
    %271 = vmatprep.subr.bf16.mxu0 %v208
    %272 = vmatpush1.bf16.msra.mxu0 %v207
    %273 = vmatprep.subr.bf16.mxu0 %v210
    %274 = vmatpush1.bf16.msra.mxu0 %v209
    %275 = vmatprep.subr.bf16.mxu0 %v212
    %276 = vmatpush1.bf16.msra.mxu0 %v211
    %277 = vmatprep.subr.bf16.mxu0 %v214
    %278 = vmatpush1.bf16.msra.mxu0 %v213
    %279 = vmatprep.subr.bf16.mxu0 %v216
    %280 = vmatpush1.bf16.msra.mxu0 %v215
    %281 = vmatprep.subr.bf16.mxu0 %v218
    %282 = vmatpush1.bf16.msra.mxu0 %v217
    %283 = vmatprep.subr.bf16.mxu0 %v220
    %284 = vmatpush1.bf16.msra.mxu0 %v219
    %285 = vmatprep.subr.bf16.mxu0 %v222
    %286 = vmatpush1.bf16.msra.mxu0 %v221
    %287 = vmatprep.subr.bf16.mxu0 %v224
    %288 = vmatpush1.bf16.msra.mxu0 %v223
    %289 = vmatprep.subr.bf16.mxu0 %v226
    %290 = vmatpush1.bf16.msra.mxu0 %v225
    %291 = vmatprep.subr.bf16.mxu0 %v228
    %292 = vmatpush1.bf16.msra.mxu0 %v227
    %293 = vmatprep.subr.bf16.mxu0 %v230
    %294 = vmatpush1.bf16.msra.mxu0 %v229
    %295 = vmatprep.subr.bf16.mxu0 %v232
    %296 = vmatpush1.bf16.msra.mxu0 %v231
    %297 = vmatprep.subr.bf16.mxu0 %v234
    %298 = vmatpush1.bf16.msra.mxu0 %v233
    %299 = vmatprep.subr.bf16.mxu0 %v236
    %300 = vmatpush1.bf16.msra.mxu0 %v235
    %301 = vmatprep.mubr.bf16.mxu0 %v64
    %302 = vmatmul.mubr.bf16.gmra.mrb[0].mxu0 %v63
    %v303 = vpop.f32.mrb[0].mxu0
    %v304 = vadd.f32 %v102, %v303
    %v305 = vpop.f32.mrb[0].mxu0
    %v306 = vadd.f32 %v106, %v305
    %v307 = vpop.f32.mrb[0].mxu0
    %v308 = vpop.f32.mrb[0].mxu0
    %309 = vdwg.mxu0
    %v310 = vmax.f32 %v304, 0.0
    %v311 = vmax.f32 %v306, 0.0
    %v312 = vpack.c.bf16 %v310, %v310
    %v313 = vpack.c.bf16 %v311, %v311
    %v314 = vld [vmem:[#allocation7] sm:$0xf]
    %v315 = vld [vmem:[#allocation7 + $0x4] sm:$0xf]
    %v316 = vld [vmem:[#allocation7 + $0x8] sm:$0xf]
    %v317 = vld [vmem:[#allocation7 + $0xc] sm:$0xf]
    %v318 = vld [vmem:[#allocation7 + $0x10] sm:$0xf]
    %v319 = vld [vmem:[#allocation7 + $0x14] sm:$0xf]
    %v320 = vld [vmem:[#allocation7 + $0x18] sm:$0xf]
    %v321 = vld [vmem:[#allocation7 + $0x1c] sm:$0xf]
    %v322 = vld [vmem:[#allocation7 + $0x20] sm:$0xf]
    %v323 = vld [vmem:[#allocation7 + $0x24] sm:$0xf]
    %v324 = vld [vmem:[#allocation7 + $0x28] sm:$0xf]
    %v325 = vld [vmem:[#allocation7 + $0x2c] sm:$0xf]
    %v326 = vld [vmem:[#allocation7 + $0x30] sm:$0xf]
    %v327 = vld [vmem:[#allocation7 + $0x34] sm:$0xf]
    %v328 = vld [vmem:[#allocation7 + $0x38] sm:$0xf]
    %v329 = vld [vmem:[#allocation7 + $0x3c] sm:$0xf]
    %v330 = vld [vmem:[#allocation7 + $0x40] sm:$0xf]
    %v331 = vld [vmem:[#allocation7 + $0x44] sm:$0xf]
    %v332 = vld [vmem:[#allocation7 + $0x48] sm:$0xf]
    %v333 = vld [vmem:[#allocation7 + $0x4c] sm:$0xf]
    %v334 = vld [vmem:[#allocation7 + $0x50] sm:$0xf]
    %v335 = vld [vmem:[#allocation7 + $0x54] sm:$0xf]
    %v336 = vld [vmem:[#allocation7 + $0x58] sm:$0xf]
    %v337 = vld [vmem:[#allocation7 + $0x5c] sm:$0xf]
    %v338 = vld [vmem:[#allocation7 + $0x60] sm:$0xf]
    %v339 = vld [vmem:[#allocation7 + $0x64] sm:$0xf]
    %v340 = vld [vmem:[#allocation7 + $0x68] sm:$0xf]
    %v341 = vld [vmem:[#allocation7 + $0x6c] sm:$0xf]
    %v342 = vld [vmem:[#allocation7 + $0x70] sm:$0xf]
    %v343 = vld [vmem:[#allocation7 + $0x74] sm:$0xf]
    %v344 = vld [vmem:[#allocation7 + $0x78] sm:$0xf]
    %v345 = vld [vmem:[#allocation7 + $0x7c] sm:$0xf]
    %v346 = vld [vmem:[%s4] sm:$0x1]
    %v348 = vlaneseq
    %v349 = vshrl.u32 %v348, 7
    %v350 = vsub.s32 0, %v349
    %v351 = vrot.slane %v346, %v350
    %v385 = vunpack.c.l.b16 %v314
    %v386 = vunpack.c.l.b16 %v315
    %v387 = vunpack.c.l.b16 %v316
    %v388 = vunpack.c.l.b16 %v317
    %v389 = vunpack.c.l.b16 %v318
    %v390 = vunpack.c.l.b16 %v319
    %v391 = vunpack.c.l.b16 %v320
    %v392 = vunpack.c.l.b16 %v321
    %v393 = vunpack.c.l.b16 %v322
    %v394 = vunpack.c.l.b16 %v323
    %v395 = vunpack.c.l.b16 %v324
    %v396 = vunpack.c.l.b16 %v325
    %v397 = vunpack.c.l.b16 %v326
    %v398 = vunpack.c.l.b16 %v327
    %v399 = vunpack.c.l.b16 %v328
    %v400 = vunpack.c.l.b16 %v329
    %v401 = vunpack.c.l.b16 %v330
    %v402 = vunpack.c.l.b16 %v331
    %v403 = vunpack.c.l.b16 %v332
    %v404 = vunpack.c.l.b16 %v333
    %v405 = vunpack.c.l.b16 %v334
    %v406 = vunpack.c.l.b16 %v335
    %v407 = vunpack.c.l.b16 %v336
    %v408 = vunpack.c.l.b16 %v337
    %v409 = vunpack.c.l.b16 %v338
    %v410 = vunpack.c.l.b16 %v339
    %v411 = vunpack.c.l.b16 %v340
    %v412 = vunpack.c.l.b16 %v341
    %v413 = vunpack.c.l.b16 %v342
    %v414 = vunpack.c.l.b16 %v343
    %v415 = vunpack.c.l.b16 %v344
    %v416 = vunpack.c.l.b16 %v345
    %v417 = vpack.c.b16 %v386, %v385
    %v418 = vpack.c.b16 %v388, %v387
    %v419 = vpack.c.b16 %v390, %v389
    %v420 = vpack.c.b16 %v392, %v391
    %v421 = vpack.c.b16 %v394, %v393
    %v422 = vpack.c.b16 %v396, %v395
    %v423 = vpack.c.b16 %v398, %v397
    %v424 = vpack.c.b16 %v400, %v399
    %v425 = vpack.c.b16 %v402, %v401
    %v426 = vpack.c.b16 %v404, %v403
    %v427 = vpack.c.b16 %v406, %v405
    %v428 = vpack.c.b16 %v408, %v407
    %v429 = vpack.c.b16 %v410, %v409
    %v430 = vpack.c.b16 %v412, %v411
    %v431 = vpack.c.b16 %v414, %v413
    %v432 = vpack.c.b16 %v416, %v415
    %449 = vmatprep.subr.bf16.mxu0 0
    %450 = vmatpush1.bf16.msra.mxu0 %v417
    %451 = vmatprep.subr.bf16.mxu0 0
    %452 = vmatpush1.bf16.msra.mxu0 %v418
    %453 = vmatprep.subr.bf16.mxu0 0
    %454 = vmatpush1.bf16.msra.mxu0 %v419
    %455 = vmatprep.subr.bf16.mxu0 0
    %456 = vmatpush1.bf16.msra.mxu0 %v420
    %457 = vmatprep.subr.bf16.mxu0 0
    %458 = vmatpush1.bf16.msra.mxu0 %v421
    %459 = vmatprep.subr.bf16.mxu0 0
    %460 = vmatpush1.bf16.msra.mxu0 %v422
    %461 = vmatprep.subr.bf16.mxu0 0
    %462 = vmatpush1.bf16.msra.mxu0 %v423
    %463 = vmatprep.subr.bf16.mxu0 0
    %464 = vmatpush1.bf16.msra.mxu0 %v424
    %465 = vmatprep.subr.bf16.mxu0 0
    %466 = vmatpush1.bf16.msra.mxu0 %v425
    %467 = vmatprep.subr.bf16.mxu0 0
    %468 = vmatpush1.bf16.msra.mxu0 %v426
    %469 = vmatprep.subr.bf16.mxu0 0
    %470 = vmatpush1.bf16.msra.mxu0 %v427
    %471 = vmatprep.subr.bf16.mxu0 0
    %472 = vmatpush1.bf16.msra.mxu0 %v428
    %473 = vmatprep.subr.bf16.mxu0 0
    %474 = vmatpush1.bf16.msra.mxu0 %v429
    %475 = vmatprep.subr.bf16.mxu0 0
    %476 = vmatpush1.bf16.msra.mxu0 %v430
    %477 = vmatprep.subr.bf16.mxu0 0
    %478 = vmatpush1.bf16.msra.mxu0 %v431
    %479 = vmatprep.subr.bf16.mxu0 0
    %480 = vmatpush1.bf16.msra.mxu0 %v432
    %481 = vmatprep.mubr.bf16.mxu0 %v313
    %482 = vmatmul.mubr.bf16.gmra.mrb[0].mxu0 %v312
    %v483 = vpop.f32.mrb[0].mxu0
    %v484 = vadd.f32 %v351, %v483
    %v485 = vpop.f32.mrb[0].mxu0
    %v486 = vpop.f32.mrb[0].mxu0
    %v487 = vpop.f32.mrb[0].mxu0
    %488 = vdwg.mxu0
    %489 = vst [vmem:[#allocation8] sm:$0xff] %v484
    // Predicated region
    $region34: #{tpu_custom_call.1} parent=1 // pred_check
      _
    $region35: #{tpu_custom_call.1} parent=1 // pred_check_branch
      %491 = sbr.rel (0) target = $region37
    $region36: #{tpu_custom_call.1} parent=1 // pred_region
      %s493 = ssub.s32 128, 128
      %494 = vsyncadd [#allocation4], %s493
      %s496 = sshll.u32 [#allocation8], 4
      %s497 = int_to_ptr.vmem [resolvable:$true] %s496
      %499 = dma.vmem_to_hbm [thread:$0]  %s497, 128, %s5, [#allocation4]
    $region37: #{tpu_custom_call.1} parent=1 // pred_fallthru
      _
    // Predicated region
    $region38: #{tpu_custom_call.1} parent=1 // pred_check
      _
    $region39: #{tpu_custom_call.1} parent=1 // pred_check_branch
      %501 = sbr.rel (0) target = $region41
    $region40: #{tpu_custom_call.1} parent=1 // pred_region
      %502 = dma.done [#allocation4], 128
    $region41: #{tpu_custom_call.1} parent=1 // pred_fallthru
      _
    %503 = vsyncpa [#allocation3], 1
    %504 = vsyncpa [#allocation6], 1
    %505 = vsyncpa [#allocation4], 1

</llo_original>
